<compile_context>
chip_gen: v7x
topology: tpu7x:2x2x1
jax: 0.10.0
libtpu: 0.0.40
codegen_flags: <defaults>
</compile_context>

<pallas_src>
import functools

import jax
import jax.numpy as jnp
from jax.experimental import pallas as pl
from jax.experimental.pallas import tpu as pltpu


# ---------------------------------------------------------------------------
# hardware / sizing helpers
# ---------------------------------------------------------------------------

def _device_kind():
    try:
        return jax.devices()[0].device_kind.lower()
    except Exception:
        return ""


def _vmem_and_cores():
    """(per-TensorCore VMEM bytes, TensorCores per chip)."""
    kind = _device_kind()
    is_v7 = "v7" in kind
    num_cores = 2 if is_v7 else 1

    cap = None
    try:
        info = pltpu.get_tpu_info()
        cap = getattr(info, "vmem_capacity_bytes", None)
    except Exception:
        cap = None

    if cap:
        cap = int(cap)
        # If the query reports per-chip capacity on v7x (2 TCs), halve it.
        if is_v7 and cap > 64 * 1024 * 1024:
            cap = cap // num_cores
    else:
        # Generation-aware fallback: 128 MiB on v4/v5e/v6e, 64 MiB on v7x/unknown.
        if ("v4" in kind) or ("v5" in kind) or ("v6" in kind):
            cap = 128 * 1024 * 1024
        else:
            cap = 64 * 1024 * 1024
    return cap, num_cores


def _cdiv(a, b):
    return -(-a // b)


def _pick_nb(N, max_nb, num_cores):
    """Largest divisor of N that fits VMEM AND leaves ~4 grid steps per core.

    Prefers an even total step count on dual-TC chips (v7x)."""
    desired_steps = 4 * num_cores
    cap = min(max_nb, max(1, N // desired_steps))
    divisors = [d for d in range(1, N + 1) if N % d == 0 and d <= cap]
    if not divisors:
        return 1
    if num_cores > 1:
        even = [d for d in divisors if (N // d) % 2 == 0]
        if even:
            return max(even)
    return max(divisors)


def _fc(v, w_ref, b_ref):
    """v: (n, Cin) @ w_ref: (Cin, Cout) + b_ref: (1, Cout) -> (n, Cout), f32.

    Tiny FC: broadcast-multiply + reduce on the VPU (off the critical path;
    avoids MXU push/pop latency for 1-row operands)."""
    y = jnp.sum(v[:, :, None] * w_ref[...][None, :, :], axis=1)
    return y + b_ref[...]


# ---------------------------------------------------------------------------
# Path A: fully fused kernel (nb batch elements per grid step)
# ---------------------------------------------------------------------------

def _ca_fused_kernel(inv_hw, mul_f32, x_ref, w1t_ref, b1_ref, w2t_ref, b2_ref,
                     o_ref):
    # Pooled mean: accumulate in f32 for accuracy.  (nb, C)
    pooled = jnp.sum(x_ref[...].astype(jnp.float32), axis=-1) * inv_hw
    y1 = jnp.maximum(_fc(pooled, w1t_ref, b1_ref), 0.0)        # (nb, Cr)
    y2 = jax.nn.sigmoid(_fc(y1, w2t_ref, b2_ref))              # (nb, C) f32
    if mul_f32:
        # f32 inputs (astype is a no-op) or v5e (no bf16 VALU).
        o_ref[...] = (x_ref[...].astype(jnp.float32)
                      * y2[:, :, None]).astype(o_ref.dtype)
    else:
        # bf16/f16 on v6e/v7x: multiply in the native dtype -> half the
        # vreg footprint and no full-slab f32 temp.
        o_ref[...] = (x_ref[...] * y2.astype(o_ref.dtype)[:, :, None]
                      ).astype(o_ref.dtype)


def _run_fused(x_flat, w1t, b1r, w2t, b2r, nb, mul_f32, vmem_limit):
    N, C, HW = x_flat.shape
    Cr = w1t.shape[1]
    itemsize = x_flat.dtype.itemsize
    kernel = functools.partial(_ca_fused_kernel, 1.0 / HW, mul_f32)
    cost = pl.CostEstimate(
        flops=int(N * C * HW + 4 * N * C * Cr),
        transcendentals=int(N * C),
        bytes_accessed=int(2 * N * C * HW * itemsize + 2 * C * Cr * 4),
    )
    return pl.pallas_call(
        kernel,
        out_shape=jax.ShapeDtypeStruct((N, C, HW), x_flat.dtype),
        grid_spec=pltpu.PrefetchScalarGridSpec(
            num_scalar_prefetch=0,
            grid=(N // nb,),
            in_specs=[
                pl.BlockSpec((nb, C, HW), lambda n: (n, 0, 0)),
                pl.BlockSpec((C, Cr), lambda n: (0, 0)),
                pl.BlockSpec((1, Cr), lambda n: (0, 0)),
                pl.BlockSpec((Cr, C), lambda n: (0, 0)),
                pl.BlockSpec((1, C), lambda n: (0, 0)),
            ],
            out_specs=pl.BlockSpec((nb, C, HW), lambda n: (n, 0, 0)),
        ),
        compiler_params=pltpu.CompilerParams(
            dimension_semantics=("parallel",),
            vmem_limit_bytes=vmem_limit,
        ),
        cost_estimate=cost,
    )(x_flat, w1t, b1r, w2t, b2r)


# ---------------------------------------------------------------------------
# Path B: two-pass tiled fallback (huge H*W that does not fit VMEM)
# ---------------------------------------------------------------------------

def _pool_fc_kernel(inv_hw, n_chunks, x_ref, w1t_ref, b1_ref, w2t_ref, b2_ref,
                    att_ref, acc_ref):
    t = pl.program_id(1)

    @pl.when(t == 0)
    def _():
        acc_ref[...] = jnp.zeros_like(acc_ref)

    # Lane-wise (1, C, 128) partial sums: pure VALU adds in the inner loop;
    # the cross-lane (XLU) reduce happens only once, at the last tile.
    for j in range(n_chunks):
        acc_ref[...] += x_ref[:, :, pl.ds(j * 128, 128)].astype(jnp.float32)

    @pl.when(t == pl.num_programs(1) - 1)
    def _():
        pooled = jnp.sum(acc_ref[...], axis=-1) * inv_hw               # (1, C)
        y1 = jnp.maximum(_fc(pooled, w1t_ref, b1_ref), 0.0)            # (1, Cr)
        y2 = jax.nn.sigmoid(_fc(y1, w2t_ref, b2_ref))                  # (1, C)
        att_ref[0] = y2


def _rescale_kernel(mul_f32, x_ref, att_ref, o_ref):
    scale = att_ref[0]                                   # (1, C) f32
    if mul_f32:
        o_ref[...] = (x_ref[...].astype(jnp.float32)
                      * scale[:, :, None]).astype(o_ref.dtype)
    else:
        o_ref[...] = (x_ref[...] * scale.astype(o_ref.dtype)[:, :, None]
                      ).astype(o_ref.dtype)


def _run_two_pass(x_flat, w1t, b1r, w2t, b2r, mul_f32, num_cores,
                  vmem_budget, vmem_limit):
    N, C, HW = x_flat.shape
    Cr = w1t.shape[1]
    itemsize = x_flat.dtype.itemsize

    # Lane-dense spatial tile T (multiple of 128):
    #   * small enough that there are >= max(4, 2*cores) tiles (pipelining),
    #   * <= 2048 lanes (already past the HBM roofline knee),
    #   * fits the VMEM budget (double-buffered in + out + f32 temp in pass 2).
    per_col_bytes = C * (4 * itemsize + 4)
    t_max = max(128, (vmem_budget // per_col_bytes) // 128 * 128)
    min_tiles = max(4, 2 * num_cores)
    t_target = _cdiv(_cdiv(HW, min_tiles), 128) * 128
    T = max(128, min(t_max, t_target, 2048))
    n_tiles = _cdiv(HW, T)
    HW_pad = n_tiles * T

    if HW_pad != HW:
        x_flat = jnp.pad(x_flat, ((0, 0), (0, 0), (0, HW_pad - HW)))

    inv_hw = 1.0 / HW  # divide by the TRUE spatial size; zero padding is benign
    n_chunks = T // 128

    att = pl.pallas_call(
        functools.partial(_pool_fc_kernel, inv_hw, n_chunks),
        out_shape=jax.ShapeDtypeStruct((N, 1, C), jnp.float32),
        grid_spec=pltpu.PrefetchScalarGridSpec(
            num_scalar_prefetch=0,
            grid=(N, n_tiles),
            in_specs=[
                pl.BlockSpec((1, C, T), lambda n, t: (n, 0, t)),
                pl.BlockSpec((C, Cr), lambda n, t: (0, 0)),
                pl.BlockSpec((1, Cr), lambda n, t: (0, 0)),
                pl.BlockSpec((Cr, C), lambda n, t: (0, 0)),
                pl.BlockSpec((1, C), lambda n, t: (0, 0)),
            ],
            out_specs=pl.BlockSpec((1, 1, C), lambda n, t: (n, 0, 0)),
            scratch_shapes=[pltpu.VMEM((1, C, 128), jnp.float32)],
        ),
        compiler_params=pltpu.CompilerParams(
            dimension_semantics=("parallel", "arbitrary"),
            vmem_limit_bytes=vmem_limit,
        ),
    )(x_flat, w1t, b1r, w2t, b2r)

    out = pl.pallas_call(
        functools.partial(_rescale_kernel, mul_f32),
        out_shape=jax.ShapeDtypeStruct((N, C, HW_pad), x_flat.dtype),
        grid_spec=pltpu.PrefetchScalarGridSpec(
            num_scalar_prefetch=0,
            grid=(N, n_tiles),
            in_specs=[
                pl.BlockSpec((1, C, T), lambda n, t: (n, 0, t)),
                pl.BlockSpec((1, 1, C), lambda n, t: (n, 0, 0)),
            ],
            out_specs=pl.BlockSpec((1, C, T), lambda n, t: (n, 0, t)),
        ),
        compiler_params=pltpu.CompilerParams(
            dimension_semantics=("parallel", "parallel"),
            vmem_limit_bytes=vmem_limit,
        ),
    )(x_flat, att)

    if HW_pad != HW:
        out = out[:, :, :HW]
    return out


# ---------------------------------------------------------------------------
# public wrapper
# ---------------------------------------------------------------------------

def channel_attention(x, w1, b1, w2, b2, *, force_two_pass=False):
    """RCAN CA forward.

    x:  (N, C, H, W)          NCHW input
    w1: (Cr, C)               Conv2d(C, Cr, 1).weight squeezed, b1: (Cr,)
    w2: (C, Cr)               Conv2d(Cr, C, 1).weight squeezed, b2: (C,)
    """
    N, C, H, W = x.shape
    HW = H * W
    Cr = w1.shape[0]
    itemsize = jnp.dtype(x.dtype).itemsize

    # Layout plumbing outside the kernel: transposed weights so both FCs are
    # plain (n, Cin) @ (Cin, Cout); biases as (1, Cout) rows.
    w1t = jnp.transpose(w1)          # (C, Cr)
    w2t = jnp.transpose(w2)          # (Cr, C)
    b1r = b1.reshape(1, Cr)
    b2r = b2.reshape(1, C)

    x_flat = x.reshape(N, C, HW)

    vmem_cap, num_cores = _vmem_and_cores()
    vmem_budget = int(vmem_cap * 0.70)   # headroom for weights / temps / pipeline
    vmem_limit = int(vmem_cap * 0.90)    # explicit scoped-VMEM limit

    # Multiply in the native dtype on bf16-VALU chips; f32 for f32 inputs / v5e.
    kind = _device_kind()
    mul_f32 = (itemsize >= 4) or ("v5" in kind)

    # Per batch element: double-buffered in + out blocks, plus 4 B/elem for
    # the f32 pooling temp.
    per_elem_bytes = C * HW * (4 * itemsize + 4)

    use_fused = (not force_two_pass) and (per_elem_bytes <= vmem_budget)

    if use_fused:
        max_nb = max(1, vmem_budget // per_elem_bytes)
        nb = _pick_nb(N, max_nb, num_cores)
        out = _run_fused(x_flat, w1t, b1r, w2t, b2r, nb, mul_f32, vmem_limit)
    else:
        out = _run_two_pass(x_flat, w1t, b1r, w2t, b2r, mul_f32, num_cores,
                            vmem_budget, vmem_limit)

    return out.reshape(N, C, H, W)


def ca_reference(x, w1, b1, w2, b2):
    """Pure-JAX reference for correctness checking."""
    pooled = jnp.mean(x, axis=(2, 3))                       # (N, C)
    y1 = jnp.maximum(pooled @ w1.T + b1, 0.0)               # (N, Cr)
    y2 = jax.nn.sigmoid(y1 @ w2.T + b2)                     # (N, C)
    return x * y2[:, :, None, None]


if __name__ == "__main__":
    # Module defaults: num_fea=64, reduction=16 -> Cr=4; small spatial size.
    N, C, H, W = 2, 64, 16, 16
    reduction = 16
    Cr = C // reduction

    key = jax.random.PRNGKey(0)
    kx, k1, k2, k3, k4 = jax.random.split(key, 5)

    x = jax.random.normal(kx, (N, C, H, W), dtype=jnp.float32)
    w1 = 0.1 * jax.random.normal(k1, (Cr, C), dtype=jnp.float32)   # Conv2d(C, Cr, 1).weight
    b1 = 0.1 * jax.random.normal(k2, (Cr,), dtype=jnp.float32)     # Conv2d(C, Cr, 1).bias
    w2 = 0.1 * jax.random.normal(k3, (C, Cr), dtype=jnp.float32)   # Conv2d(Cr, C, 1).weight
    b2 = 0.1 * jax.random.normal(k4, (C,), dtype=jnp.float32)      # Conv2d(Cr, C, 1).bias

    ref = ca_reference(x, w1, b1, w2, b2)

    # Path A: fused single-kernel (default).
    out = jax.block_until_ready(channel_attention(x, w1, b1, w2, b2))
    assert out.shape == (N, C, H, W)
    assert jnp.allclose(out, ref, atol=1e-5, rtol=1e-5), "fused path mismatch"

    # Path A with N == 1 also goes through the fused kernel now.
    out_n1 = jax.block_until_ready(channel_attention(x[:1], w1, b1, w2, b2))
    assert jnp.allclose(out_n1, ref[:1], atol=1e-5, rtol=1e-5), "fused N==1 mismatch"

    # Path B: two-pass tiled fallback (exercised explicitly).
    out1 = jax.block_until_ready(
        channel_attention(x[:1], w1, b1, w2, b2, force_two_pass=True))
    assert out1.shape == (1, C, H, W)
    assert jnp.allclose(out1, ref[:1], atol=1e-5, rtol=1e-5), "two-pass path mismatch"

    print("KERNEL_OK")
</pallas_src>

<mosaic_0001>
module attributes {stable_mosaic.version = 11 : i64} {
  func.func @_ca_fused_kernel(%arg0: i32, %arg1: memref<1x64x256xf32, #tpu.memory_space<vmem>>, %arg2: memref<64x4xf32, #tpu.memory_space<vmem>>, %arg3: memref<1x4xf32, #tpu.memory_space<vmem>>, %arg4: memref<4x64xf32, #tpu.memory_space<vmem>>, %arg5: memref<1x64xf32, #tpu.memory_space<vmem>>, %arg6: memref<1x64x256xf32, #tpu.memory_space<vmem>>) attributes {dimension_semantics = [#tpu.dimension_semantics<parallel>], iteration_bounds = array<i64: 2>, scalar_prefetch = 0 : i64, scratch_operands = 0 : i64, tpu.core_type = #tpu.core_type<tc>, window_params = [{transform_indices = @transform_0, window_bounds = array<i64: 1, 64, 256>}, {pipeline_mode = #tpu.pipeline_mode<synchronous>, transform_indices = @transform_1, window_bounds = array<i64: 64, 4>}, {pipeline_mode = #tpu.pipeline_mode<synchronous>, transform_indices = @transform_2, window_bounds = array<i64: 1, 4>}, {pipeline_mode = #tpu.pipeline_mode<synchronous>, transform_indices = @transform_3, window_bounds = array<i64: 4, 64>}, {pipeline_mode = #tpu.pipeline_mode<synchronous>, transform_indices = @transform_4, window_bounds = array<i64: 1, 64>}, {transform_indices = @transform_5, window_bounds = array<i64: 1, 64, 256>}]} {
    %c0 = arith.constant 0 : index
    %c0_0 = arith.constant 0 : index
    %c0_1 = arith.constant 0 : index
    %0 = vector.load %arg1[%c0, %c0_0, %c0_1] : memref<1x64x256xf32, #tpu.memory_space<vmem>>, vector<1x64x256xf32>
    %cst = arith.constant dense<0.000000e+00> : vector<1x64xf32>
    %1 = vector.multi_reduction <add>, %0, %cst [2] : vector<1x64x256xf32> to vector<1x64xf32>
    %cst_2 = arith.constant 3.906250e-03 : f32
    %2 = vector.broadcast %cst_2 : f32 to vector<1x64xf32>
    %3 = arith.mulf %1, %2 : vector<1x64xf32>
    %4 = vector.shape_cast %3 : vector<1x64xf32> to vector<1x64x1xf32>
    %c0_3 = arith.constant 0 : index
    %c0_4 = arith.constant 0 : index
    %5 = vector.load %arg2[%c0_3, %c0_4] : memref<64x4xf32, #tpu.memory_space<vmem>>, vector<64x4xf32>
    %6 = vector.shape_cast %5 : vector<64x4xf32> to vector<1x64x4xf32>
    %7 = vector.broadcast %4 : vector<1x64x1xf32> to vector<1x64x4xf32>
    %8 = arith.mulf %7, %6 : vector<1x64x4xf32>
    %cst_5 = arith.constant dense<0.000000e+00> : vector<1x4xf32>
    %9 = vector.multi_reduction <add>, %8, %cst_5 [1] : vector<1x64x4xf32> to vector<1x4xf32>
    %c0_6 = arith.constant 0 : index
    %c0_7 = arith.constant 0 : index
    %10 = vector.load %arg3[%c0_6, %c0_7] : memref<1x4xf32, #tpu.memory_space<vmem>>, vector<1x4xf32>
    %11 = arith.addf %9, %10 : vector<1x4xf32>
    %cst_8 = arith.constant 0.000000e+00 : f32
    %12 = vector.broadcast %cst_8 : f32 to vector<1x4xf32>
    %13 = arith.maximumf %11, %12 : vector<1x4xf32>
    %14 = vector.shape_cast %13 : vector<1x4xf32> to vector<1x4x1xf32>
    %c0_9 = arith.constant 0 : index
    %c0_10 = arith.constant 0 : index
    %15 = vector.load %arg4[%c0_9, %c0_10] : memref<4x64xf32, #tpu.memory_space<vmem>>, vector<4x64xf32>
    %16 = vector.shape_cast %15 : vector<4x64xf32> to vector<1x4x64xf32>
    %17 = vector.broadcast %14 : vector<1x4x1xf32> to vector<1x4x64xf32>
    %18 = arith.mulf %17, %16 : vector<1x4x64xf32>
    %cst_11 = arith.constant dense<0.000000e+00> : vector<1x64xf32>
    %19 = vector.multi_reduction <add>, %18, %cst_11 [1] : vector<1x4x64xf32> to vector<1x64xf32>
    %c0_12 = arith.constant 0 : index
    %c0_13 = arith.constant 0 : index
    %20 = vector.load %arg5[%c0_12, %c0_13] : memref<1x64xf32, #tpu.memory_space<vmem>>, vector<1x64xf32>
    %21 = arith.addf %19, %20 : vector<1x64xf32>
    %22 = arith.negf %21 : vector<1x64xf32>
    %23 = math.exp %22 : vector<1x64xf32>
    %cst_14 = arith.constant 1.000000e+00 : f32
    %24 = vector.broadcast %cst_14 : f32 to vector<1x64xf32>
    %25 = arith.addf %24, %23 : vector<1x64xf32>
    %26 = arith.divf %24, %25 : vector<1x64xf32>
    %c0_15 = arith.constant 0 : index
    %c0_16 = arith.constant 0 : index
    %c0_17 = arith.constant 0 : index
    %27 = vector.load %arg1[%c0_15, %c0_16, %c0_17] : memref<1x64x256xf32, #tpu.memory_space<vmem>>, vector<1x64x256xf32>
    %28 = vector.shape_cast %26 : vector<1x64xf32> to vector<1x64x1xf32>
    %29 = vector.broadcast %28 : vector<1x64x1xf32> to vector<1x64x256xf32>
    %30 = arith.mulf %27, %29 : vector<1x64x256xf32>
    %c0_18 = arith.constant 0 : index
    %c0_19 = arith.constant 0 : index
    %c0_20 = arith.constant 0 : index
    %31 = vector.load %arg6[%c0_18, %c0_19, %c0_20] : memref<1x64x256xf32, #tpu.memory_space<vmem>>, vector<1x64x256xf32>
    tpu.vector_store %arg6[%c0_18, %c0_19, %c0_20], %30 {strides = array<i32>} : memref<1x64x256xf32, #tpu.memory_space<vmem>>, vector<1x64x256xf32>,
    return
  }
  func.func @transform_0(%arg0: i32) -> (i32, i32, i32) {
    %c0_i32 = arith.constant 0 : i32
    %c0_i32_0 = arith.constant 0 : i32
    %c0_i32_1 = arith.constant 0 : i32
    return %arg0, %c0_i32, %c0_i32_0 : i32, i32, i32
  }
  func.func @transform_1(%arg0: i32) -> (i32, i32) {
    %c0_i32 = arith.constant 0 : i32
    %c0_i32_0 = arith.constant 0 : i32
    %c0_i32_1 = arith.constant 0 : i32
    return %c0_i32, %c0_i32_0 : i32, i32
  }
  func.func @transform_2(%arg0: i32) -> (i32, i32) {
    %c0_i32 = arith.constant 0 : i32
    %c0_i32_0 = arith.constant 0 : i32
    %c0_i32_1 = arith.constant 0 : i32
    return %c0_i32, %c0_i32_0 : i32, i32
  }
  func.func @transform_3(%arg0: i32) -> (i32, i32) {
    %c0_i32 = arith.constant 0 : i32
    %c0_i32_0 = arith.constant 0 : i32
    %c0_i32_1 = arith.constant 0 : i32
    return %c0_i32, %c0_i32_0 : i32, i32
  }
  func.func @transform_4(%arg0: i32) -> (i32, i32) {
    %c0_i32 = arith.constant 0 : i32
    %c0_i32_0 = arith.constant 0 : i32
    %c0_i32_1 = arith.constant 0 : i32
    return %c0_i32, %c0_i32_0 : i32, i32
  }
  func.func @transform_5(%arg0: i32) -> (i32, i32, i32) {
    %c0_i32 = arith.constant 0 : i32
    %c0_i32_0 = arith.constant 0 : i32
    %c0_i32_1 = arith.constant 0 : i32
    return %arg0, %c0_i32, %c0_i32_0 : i32, i32, i32
  }
}

</mosaic_0001>

<llo_original>
// kernel: tpu_custom_call.1
$region0: #{tpu_custom_call.1}
  #allocation0 [shape = 'u32[]', space=smem, size = 0x4, offset = 0x4, fixed_abs, tag = 'smem constant byte address 0x4 - core index']
  #allocation1 [shape = 'u32[144,128]{1,0:T(1,128)}', space=vmem, size = 0x12000, scoped, tag = 'internal scratch']
  %s0 = inlined_call_operand.hbm [shape: f32[2,64,256], index: 0, kind: input, shape index: {}]
  %s1 = inlined_call_operand.vmem [shape: f32[64,4], index: 1, kind: input, shape index: {}]
  %s2 = inlined_call_operand.vmem [shape: f32[1,4], index: 2, kind: input, shape index: {}]
  %s3 = inlined_call_operand.vmem [shape: f32[4,64], index: 3, kind: input, shape index: {}]
  %s4 = inlined_call_operand.vmem [shape: f32[1,64], index: 4, kind: input, shape index: {}]
  %s5 = inlined_call_operand.hbm [shape: f32[2,64,256], index: 5, kind: output, shape index: {}]
  %s6 = sld [smem:[#allocation0]]
  $region57: #{tpu_custom_call.1} parent=0
    _
  %s8 = ssub.s32 1, %s6
  %s9 = scalar_select 0, %s8, %s6
  $region1: #{tpu_custom_call.1} parent=0
    #allocation2 [shape = 'u8[131072]{0}', space=vmem, size = 0x20000, scoped, tag = 'input window, operand 0']
    #allocation3 [shape = 's32[2]{0}', space=sflag, size = 0x8, scoped, tag = 'scoped memory for tpu_custom_call.1']
    #allocation4 [shape = 's32[2]{0}', space=sflag, size = 0x8, scoped, tag = 'scoped memory for tpu_custom_call.1']
    #allocation5 [shape = 'u8[131072]{0}', space=vmem, size = 0x20000, scoped, tag = 'output window, operand 0']
    %10 = vsyncpa [#allocation3], 0
    %s11 = scalar_lea.sflag [#allocation3], 1
    %12 = vsyncpa %s11, 0
    %13 = vsyncpa [#allocation4], 0
    %s14 = scalar_lea.sflag [#allocation4], 1
    %15 = vsyncpa %s14, 0
    loop: start=0, step=1, limit=4
    $region2: #{tpu_custom_call.1} parent=1 // loop_pre_header
      _
    $region3: #{tpu_custom_call.1} parent=1 // loop_header
      %s17 = sphi 0, %s21
      %p18 = scmp.ge.s32.totalorder %s17, 4
      %s27 = sphi 0, %s29
      %s30 = sphi 0, %s27
      %s31 = sphi 0, %s30
      %s47 = sphi 0, %s31
      %s51 = sphi 0, %s51
      %s53 = sphi 0, %s51
      %s54 = sphi 0, %s53
      %s68 = sphi 0, %s54
      %s72 = sphi 0, %s72
      %s74 = sphi 0, %s72
      %s75 = sphi 0, %s74
      %s89 = sphi 0, %s75
      %s93 = sphi 0, %s93
      %s95 = sphi 0, %s93
      %s96 = sphi 0, %s95
      %s110 = sphi 0, %s96
      %s114 = sphi 0, %s114
      %s116 = sphi 0, %s114
      %s117 = sphi 0, %s116
      %s131 = sphi 0, %s117
      %s137 = sphi 0, %s139
      %s140 = sphi 0, %s137
      %s141 = sphi 0, %s140
      %s157 = sphi 0, %s141
    $region4: #{tpu_custom_call.1} parent=1 // loop_header_branch
      %20 = sbr.rel (%p18) target = $region8
    $region5: #{tpu_custom_call.1} parent=1 // loop_body
      %s22 = ssub.s32 %s17, 1
      %s23 = ssub.s32 %s17, 2
      %s24 = sadd.s32 %s17, 1
      %s25 = ssub.s32 %s17, %s24
      %p26 = scmp.eq.s32.totalorder %s25, 0
      %s28 = sadd.s32 %s27, 1
      %s29 = scalar_select %p26, %s27, %s28
      %p32 = pneg %p26
      %p33 = scmp.eq.s32.totalorder %s17, 1
      %p34 = por %p32, %p33
      %p35 = scmp.ne.s32.totalorder %s27, %s30
      %p36 = scmp.eq.s32.totalorder %s17, 0
      %p37 = por %p35, %p36
      %p38 = scmp.ne.s32.totalorder %s27, %s30
      %p39 = scmp.eq.s32.totalorder %s22, 1
      %p40 = por %p38, %p39
      %p41 = scmp.ne.s32.totalorder %s30, %s31
      %p42 = scmp.eq.s32.totalorder %s22, 0
      %p43 = por %p41, %p42
      %p44 = scmp.ne.s32.totalorder %s30, %s31
      %p45 = scmp.eq.s32.totalorder %s23, 1
      %p46 = por %p44, %p45
      %p48 = scmp.ne.s32.totalorder %s31, %s47
      %p49 = scmp.eq.s32.totalorder %s23, 0
      %p50 = por %p48, %p49
      %s52 = sadd.s32 %s51, 1
      %p55 = scmp.eq.s32.totalorder %s17, 1
      %p56 = scmp.ne.s32.totalorder %s51, %s53
      %p57 = scmp.eq.s32.totalorder %s17, 0
      %p58 = por %p56, %p57
      %p59 = scmp.ne.s32.totalorder %s51, %s53
      %p60 = scmp.eq.s32.totalorder %s22, 1
      %p61 = por %p59, %p60
      %p62 = scmp.ne.s32.totalorder %s53, %s54
      %p63 = scmp.eq.s32.totalorder %s22, 0
      %p64 = por %p62, %p63
      %p65 = scmp.ne.s32.totalorder %s53, %s54
      %p66 = scmp.eq.s32.totalorder %s23, 1
      %p67 = por %p65, %p66
      %p69 = scmp.ne.s32.totalorder %s54, %s68
      %p70 = scmp.eq.s32.totalorder %s23, 0
      %p71 = por %p69, %p70
      %s73 = sadd.s32 %s72, 1
      %p76 = scmp.eq.s32.totalorder %s17, 1
      %p77 = scmp.ne.s32.totalorder %s72, %s74
      %p78 = scmp.eq.s32.totalorder %s17, 0
      %p79 = por %p77, %p78
      %p80 = scmp.ne.s32.totalorder %s72, %s74
      %p81 = scmp.eq.s32.totalorder %s22, 1
      %p82 = por %p80, %p81
      %p83 = scmp.ne.s32.totalorder %s74, %s75
      %p84 = scmp.eq.s32.totalorder %s22, 0
      %p85 = por %p83, %p84
      %p86 = scmp.ne.s32.totalorder %s74, %s75
      %p87 = scmp.eq.s32.totalorder %s23, 1
      %p88 = por %p86, %p87
      %p90 = scmp.ne.s32.totalorder %s75, %s89
      %p91 = scmp.eq.s32.totalorder %s23, 0
      %p92 = por %p90, %p91
      %s94 = sadd.s32 %s93, 1
      %p97 = scmp.eq.s32.totalorder %s17, 1
      %p98 = scmp.ne.s32.totalorder %s93, %s95
      %p99 = scmp.eq.s32.totalorder %s17, 0
      %p100 = por %p98, %p99
      %p101 = scmp.ne.s32.totalorder %s93, %s95
      %p102 = scmp.eq.s32.totalorder %s22, 1
      %p103 = por %p101, %p102
      %p104 = scmp.ne.s32.totalorder %s95, %s96
      %p105 = scmp.eq.s32.totalorder %s22, 0
      %p106 = por %p104, %p105
      %p107 = scmp.ne.s32.totalorder %s95, %s96
      %p108 = scmp.eq.s32.totalorder %s23, 1
      %p109 = por %p107, %p108
      %p111 = scmp.ne.s32.totalorder %s96, %s110
      %p112 = scmp.eq.s32.totalorder %s23, 0
      %p113 = por %p111, %p112
      %s115 = sadd.s32 %s114, 1
      %p118 = scmp.eq.s32.totalorder %s17, 1
      %p119 = scmp.ne.s32.totalorder %s114, %s116
      %p120 = scmp.eq.s32.totalorder %s17, 0
      %p121 = por %p119, %p120
      %p122 = scmp.ne.s32.totalorder %s114, %s116
      %p123 = scmp.eq.s32.totalorder %s22, 1
      %p124 = por %p122, %p123
      %p125 = scmp.ne.s32.totalorder %s116, %s117
      %p126 = scmp.eq.s32.totalorder %s22, 0
      %p127 = por %p125, %p126
      %p128 = scmp.ne.s32.totalorder %s116, %s117
      %p129 = scmp.eq.s32.totalorder %s23, 1
      %p130 = por %p128, %p129
      %p132 = scmp.ne.s32.totalorder %s117, %s131
      %p133 = scmp.eq.s32.totalorder %s23, 0
      %p134 = por %p132, %p133
      %s135 = ssub.s32 %s17, %s24
      %p136 = scmp.eq.s32.totalorder %s135, 0
      %s138 = sadd.s32 %s137, 1
      %s139 = scalar_select %p136, %s137, %s138
      %p142 = pneg %p136
      %p143 = scmp.eq.s32.totalorder %s17, 1
      %p144 = por %p142, %p143
      %p145 = scmp.ne.s32.totalorder %s137, %s140
      %p146 = scmp.eq.s32.totalorder %s17, 0
      %p147 = por %p145, %p146
      %p148 = scmp.ne.s32.totalorder %s137, %s140
      %p149 = scmp.eq.s32.totalorder %s22, 1
      %p150 = por %p148, %p149
      %p151 = scmp.ne.s32.totalorder %s140, %s141
      %p152 = scmp.eq.s32.totalorder %s22, 0
      %p153 = por %p151, %p152
      %p154 = scmp.ne.s32.totalorder %s140, %s141
      %p155 = scmp.eq.s32.totalorder %s23, 1
      %p156 = por %p154, %p155
      %p158 = scmp.ne.s32.totalorder %s141, %s157
      %p159 = scmp.eq.s32.totalorder %s23, 0
      %p160 = por %p158, %p159
      %p161 = scmp.le.s32.totalorder 1, %s17
      %p162 = scmp.lt.s32.totalorder %s17, 3
      %p163 = pnand %p161, %p162
      %p164 = pneg %p163
      // Predicated region
      $region9: #{tpu_custom_call.1} parent=5 // pred_check
        _
      $region10: #{tpu_custom_call.1} parent=5 // pred_check_branch
        %166 = sbr.rel (%p163) target = $region12
      $region11: #{tpu_custom_call.1} parent=5 // pred_region
        %s167 = ssub.s32 %s17, 1
        // Predicated region
        $region13: #{tpu_custom_call.1} parent=11 // pred_check
          %p168 = pneg %p64
        $region14: #{tpu_custom_call.1} parent=11 // pred_check_branch
          %170 = sbr.rel (%p168) target = $region16
        $region15: #{tpu_custom_call.1} parent=11 // pred_region
          _
        $region16: #{tpu_custom_call.1} parent=11 // pred_fallthru
          _
        // Predicated region
        $region17: #{tpu_custom_call.1} parent=11 // pred_check
          %p171 = pneg %p85
        $region18: #{tpu_custom_call.1} parent=11 // pred_check_branch
          %173 = sbr.rel (%p171) target = $region20
        $region19: #{tpu_custom_call.1} parent=11 // pred_region
          _
        $region20: #{tpu_custom_call.1} parent=11 // pred_fallthru
          _
        // Predicated region
        $region21: #{tpu_custom_call.1} parent=11 // pred_check
          %p174 = pneg %p106
        $region22: #{tpu_custom_call.1} parent=11 // pred_check_branch
          %176 = sbr.rel (%p174) target = $region24
        $region23: #{tpu_custom_call.1} parent=11 // pred_region
          _
        $region24: #{tpu_custom_call.1} parent=11 // pred_fallthru
          _
        // Predicated region
        $region25: #{tpu_custom_call.1} parent=11 // pred_check
          %p177 = pneg %p127
        $region26: #{tpu_custom_call.1} parent=11 // pred_check_branch
          %179 = sbr.rel (%p177) target = $region28
        $region27: #{tpu_custom_call.1} parent=11 // pred_region
          _
        $region28: #{tpu_custom_call.1} parent=11 // pred_fallthru
          _
      $region12: #{tpu_custom_call.1} parent=5 // pred_fallthru
        _
      %p180 = scmp.lt.s32.totalorder %s17, 2
      // Predicated region
      $region29: #{tpu_custom_call.1} parent=5 // pred_check
        %p181 = pneg %p180
      $region30: #{tpu_custom_call.1} parent=5 // pred_check_branch
        %183 = sbr.rel (%p181) target = $region32
      $region31: #{tpu_custom_call.1} parent=5 // pred_region
        // Predicated region
        $region33: #{tpu_custom_call.1} parent=31 // pred_check
          %p184 = pneg %p37
        $region34: #{tpu_custom_call.1} parent=31 // pred_check_branch
          %186 = sbr.rel (%p184) target = $region36
        $region35: #{tpu_custom_call.1} parent=31 // pred_region
          %s187 = sand.u32 %s27, 1
          %s188 = scalar_lea.sflag [#allocation3], %s187
          %s189 = sand.u32 %s27, 1
          %s190 = smul.addr %s189, 128
          %s191 = scalar_lea.vmem [#allocation2], %s190
          %s193 = ssub.s32 2048, 2048
          %194 = vsyncadd %s188, %s193
          %s195 = smul.addr %s17, 16
          %s196 = smul.addr %s195, 128
          %s197 = scalar_lea.hbm %s0, %s196
          %s198 = sshll.u32 %s191, 4
          %s199 = int_to_ptr.vmem [resolvable:$true] %s198
          %204 = dma.hbm_to_vmem [thread:$0]  %s197, 2048, %s199, %s188, 256, 256, 16
        $region36: #{tpu_custom_call.1} parent=31 // pred_fallthru
          _
      $region32: #{tpu_custom_call.1} parent=5 // pred_fallthru
        _
      %p205 = scmp.le.s32.totalorder 1, %s17
      %p206 = scmp.lt.s32.totalorder %s17, 3
      %p207 = pnand %p205, %p206
      %p208 = pneg %p207
      // Predicated region
      $region37: #{tpu_custom_call.1} parent=5 // pred_check
        _
      $region38: #{tpu_custom_call.1} parent=5 // pred_check_branch
        %210 = sbr.rel (%p207) target = $region40
      $region39: #{tpu_custom_call.1} parent=5 // pred_region
        %s211 = ssub.s32 %s17, 1
        %s212 = sand.u32 %s30, 1
        %s213 = scalar_lea.sflag [#allocation3], %s212
        %s214 = sand.u32 %s30, 1
        %s215 = smul.addr %s214, 128
        %s216 = scalar_lea.vmem [#allocation2], %s215
        // Predicated region
        $region41: #{tpu_custom_call.1} parent=39 // pred_check
          %p217 = pneg %p43
        $region42: #{tpu_custom_call.1} parent=39 // pred_check_branch
          %219 = sbr.rel (%p217) target = $region44
        $region43: #{tpu_custom_call.1} parent=39 // pred_region
          %220 = dma.done %s213, 2048
        $region44: #{tpu_custom_call.1} parent=39 // pred_fallthru
          _
        %s221 = sand.u32 %s30, 1
        %s222 = scalar_lea.sflag [#allocation3], %s221
        %s223 = sand.u32 %s30, 1
        %s224 = smul.addr %s223, 128
        %s225 = scalar_lea.vmem [#allocation2], %s224
        %p226 = pneg %p43
        %p227 = pneg %p40
        %p228 = pneg %p64
        %p229 = pneg %p61
        %p230 = pneg %p85
        %p231 = pneg %p82
        %p232 = pneg %p106
        %p233 = pneg %p103
        %p234 = pneg %p127
        %p235 = pneg %p124
        %p236 = pneg %p153
        %p237 = pneg %p150
        %s238 = sand.u32 %s140, 1
        %s239 = scalar_lea.sflag [#allocation4], %s238
        %s240 = sand.u32 %s140, 1
        %s241 = smul.addr %s240, 128
        %s242 = scalar_lea.vmem [#allocation5], %s241
        %v243 = vld [vmem:[%s216] sm:$0xff]
        %v244 = vld [vmem:[%s216 + $0x8] sm:$0xff]
        %v245 = vld [vmem:[%s216 + $0x10] sm:$0xff]
        %v246 = vld [vmem:[%s216 + $0x18] sm:$0xff]
        %v247 = vld [vmem:[%s216 + $0x20] sm:$0xff]
        %v248 = vld [vmem:[%s216 + $0x28] sm:$0xff]
        %v249 = vld [vmem:[%s216 + $0x30] sm:$0xff]
        %v250 = vld [vmem:[%s216 + $0x38] sm:$0xff]
        %v251 = vld [vmem:[%s216 + $0x40] sm:$0xff]
        %v252 = vld [vmem:[%s216 + $0x48] sm:$0xff]
        %v253 = vld [vmem:[%s216 + $0x50] sm:$0xff]
        %v254 = vld [vmem:[%s216 + $0x58] sm:$0xff]
        %v255 = vld [vmem:[%s216 + $0x60] sm:$0xff]
        %v256 = vld [vmem:[%s216 + $0x68] sm:$0xff]
        %v257 = vld [vmem:[%s216 + $0x70] sm:$0xff]
        %v258 = vld [vmem:[%s216 + $0x78] sm:$0xff]
        %v259 = vadd.f32 %v243, %v244
        %260 = vadd.xlane.f32.xlu0 %v259
        %v261 = vpop.xlane.xlu0 %260
        %v262 = vadd.f32 %v245, %v246
        %263 = vadd.xlane.f32.xlu0 %v262
        %v264 = vpop.xlane.xlu0 %263
        %v265 = vadd.f32 %v247, %v248
        %266 = vadd.xlane.f32.xlu0 %v265
        %v267 = vpop.xlane.xlu0 %266
        %v268 = vadd.f32 %v249, %v250
        %269 = vadd.xlane.f32.xlu0 %v268
        %v270 = vpop.xlane.xlu0 %269
        %v271 = vadd.f32 %v251, %v252
        %272 = vadd.xlane.f32.xlu0 %v271
        %v273 = vpop.xlane.xlu0 %272
        %v274 = vadd.f32 %v253, %v254
        %275 = vadd.xlane.f32.xlu0 %v274
        %v276 = vpop.xlane.xlu0 %275
        %v277 = vadd.f32 %v255, %v256
        %278 = vadd.xlane.f32.xlu0 %v277
        %v279 = vpop.xlane.xlu0 %278
        %v280 = vadd.f32 %v257, %v258
        %281 = vadd.xlane.f32.xlu0 %v280
        %v282 = vpop.xlane.xlu0 %281
        %v283 = vmul.f32 %v261, 0.00390625
        %v284 = vmul.f32 %v264, 0.00390625
        %v285 = vmul.f32 %v267, 0.00390625
        %v286 = vmul.f32 %v270, 0.00390625
        %v287 = vmul.f32 %v273, 0.00390625
        %v288 = vmul.f32 %v276, 0.00390625
        %v289 = vmul.f32 %v279, 0.00390625
        %v290 = vmul.f32 %v282, 0.00390625
        %v291 = vld [vmem:[%s1] sm:$0xff]
        %v292 = vld [vmem:[%s1 + $0x8] sm:$0xff]
        %v293 = vld [vmem:[%s1 + $0x10] sm:$0xff]
        %v294 = vld [vmem:[%s1 + $0x18] sm:$0xff]
        %v295 = vld [vmem:[%s1 + $0x20] sm:$0xff]
        %v296 = vld [vmem:[%s1 + $0x28] sm:$0xff]
        %v297 = vld [vmem:[%s1 + $0x30] sm:$0xff]
        %v298 = vld [vmem:[%s1 + $0x38] sm:$0xff]
        %v299 = vmul.f32 %v283, %v291
        %v300 = vmul.f32 %v284, %v292
        %v301 = vmul.f32 %v285, %v293
        %v302 = vmul.f32 %v286, %v294
        %v303 = vmul.f32 %v287, %v295
        %v304 = vmul.f32 %v288, %v296
        %v305 = vmul.f32 %v289, %v297
        %v306 = vmul.f32 %v290, %v298
        %vm307 = vcmask 31744
        %v308 = vsel %vm307, %v299, 0.0
        %v309 = vsel %vm307, %v300, 0.0
        %v310 = vadd.f32 %v308, %v309
        %v311 = vsel %vm307, %v301, 0.0
        %v312 = vadd.f32 %v310, %v311
        %v313 = vsel %vm307, %v302, 0.0
        %v314 = vadd.f32 %v312, %v313
        %v315 = vsel %vm307, %v303, 0.0
        %v316 = vadd.f32 %v314, %v315
        %v317 = vsel %vm307, %v304, 0.0
        %v318 = vadd.f32 %v316, %v317
        %v319 = vsel %vm307, %v305, 0.0
        %v320 = vadd.f32 %v318, %v319
        %v321 = vsel %vm307, %v306, 0.0
        %v322 = vadd.f32 %v320, %v321
        %v323 = vrot.slane %v322, 4
        %v324 = vadd.f32 %v322, %v323
        %v325 = vrot.slane %v324, 2
        %v326 = vadd.f32 %v324, %v325
        %v327 = vrot.slane %v326, 1
        %v328 = vadd.f32 %v326, %v327
        %v329 = vld [vmem:[%s2] sm:$0x1]
        %v330 = vadd.f32 %v328, %v329
        %v331 = vmax.f32 %v330, 0.0
        %v332 = vlaneseq
        %v333 = vshrl.u32 %v332, 7
        %v334 = vsub.s32 0, %v333
        %v335 = vrot.slane %v331, %v334
        %337 = vbcast.lane.b32.xlu0 %v335, 256
        %v338 = vpop.permute.xlu0 %337
        %v339 = vld [vmem:[%s3] sm:$0xf]
        %v340 = vmul.f32 %v338, %v339
        %vm341 = vcmask 519168
        %v342 = vsel %vm341, %v340, 0.0
        %v343 = vrot.slane %v342, 4
        %v344 = vadd.f32 %v342, %v343
        %v345 = vrot.slane %v344, 2
        %v346 = vadd.f32 %v344, %v345
        %v347 = vrot.slane %v346, 1
        %v348 = vadd.f32 %v346, %v347
        %v349 = vld [vmem:[%s4] sm:$0x1]
        %v350 = vadd.f32 %v348, %v349
        %v351 = vxor.u32 %v350, 2147483648
        %v352 = vmul.f32 %v351, 1.442695
        %v353 = vpow.pop %v352
        %v354 = vadd.f32 %v353, 1.0
        %v355 = vrcp.pop %v354
        %v356 = vmul.f32 1.0, %v355
        %v357 = vlaneseq
        %v358 = vshrl.u32 %v357, 7
        %v359 = vsub.s32 0, %v358
        %v360 = vrot.slane %v356, %v359
        %362 = vbcast.lane.b32.xlu0 %v360, 256
        %v363 = vpop.permute.xlu0 %362
        %s365 = sor.u32 256, 8
        %366 = vbcast.lane.b32.xlu0 %v360, %s365
        %v367 = vpop.permute.xlu0 %366
        %s369 = sor.u32 256, 16
        %370 = vbcast.lane.b32.xlu0 %v360, %s369
        %v371 = vpop.permute.xlu0 %370
        %s373 = sor.u32 256, 24
        %374 = vbcast.lane.b32.xlu0 %v360, %s373
        %v375 = vpop.permute.xlu0 %374
        %s377 = sor.u32 256, 32
        %378 = vbcast.lane.b32.xlu0 %v360, %s377
        %v379 = vpop.permute.xlu0 %378
        %s381 = sor.u32 256, 40
        %382 = vbcast.lane.b32.xlu0 %v360, %s381
        %v383 = vpop.permute.xlu0 %382
        %s385 = sor.u32 256, 48
        %386 = vbcast.lane.b32.xlu0 %v360, %s385
        %v387 = vpop.permute.xlu0 %386
        %s389 = sor.u32 256, 56
        %390 = vbcast.lane.b32.xlu0 %v360, %s389
        %v391 = vpop.permute.xlu0 %390
        %v392 = vmul.f32 %v243, %v363
        %v393 = vmul.f32 %v244, %v363
        %v394 = vmul.f32 %v245, %v367
        %v395 = vmul.f32 %v246, %v367
        %v396 = vmul.f32 %v247, %v371
        %v397 = vmul.f32 %v248, %v371
        %v398 = vmul.f32 %v249, %v375
        %v399 = vmul.f32 %v250, %v375
        %v400 = vmul.f32 %v251, %v379
        %v401 = vmul.f32 %v252, %v379
        %v402 = vmul.f32 %v253, %v383
        %v403 = vmul.f32 %v254, %v383
        %v404 = vmul.f32 %v255, %v387
        %v405 = vmul.f32 %v256, %v387
        %v406 = vmul.f32 %v257, %v391
        %v407 = vmul.f32 %v258, %v391
        %408 = vst [vmem:[%s242] sm:$0xff] %v392
        %409 = vst [vmem:[%s242 + $0x8] sm:$0xff] %v393
        %410 = vst [vmem:[%s242 + $0x10] sm:$0xff] %v394
        %411 = vst [vmem:[%s242 + $0x18] sm:$0xff] %v395
        %412 = vst [vmem:[%s242 + $0x20] sm:$0xff] %v396
        %413 = vst [vmem:[%s242 + $0x28] sm:$0xff] %v397
        %414 = vst [vmem:[%s242 + $0x30] sm:$0xff] %v398
        %415 = vst [vmem:[%s242 + $0x38] sm:$0xff] %v399
        %416 = vst [vmem:[%s242 + $0x40] sm:$0xff] %v400
        %417 = vst [vmem:[%s242 + $0x48] sm:$0xff] %v401
        %418 = vst [vmem:[%s242 + $0x50] sm:$0xff] %v402
        %419 = vst [vmem:[%s242 + $0x58] sm:$0xff] %v403
        %420 = vst [vmem:[%s242 + $0x60] sm:$0xff] %v404
        %421 = vst [vmem:[%s242 + $0x68] sm:$0xff] %v405
        %422 = vst [vmem:[%s242 + $0x70] sm:$0xff] %v406
        %423 = vst [vmem:[%s242 + $0x78] sm:$0xff] %v407
        %s424 = sand.u32 %s140, 1
        %s425 = scalar_lea.sflag [#allocation4], %s424
        %s426 = sand.u32 %s140, 1
        %s427 = smul.addr %s426, 128
        %s428 = scalar_lea.vmem [#allocation5], %s427
        // Predicated region
        $region45: #{tpu_custom_call.1} parent=39 // pred_check
          %p429 = pneg %p150
        $region46: #{tpu_custom_call.1} parent=39 // pred_check_branch
          %431 = sbr.rel (%p429) target = $region48
        $region47: #{tpu_custom_call.1} parent=39 // pred_region
          %s433 = ssub.s32 2048, 2048
          %434 = vsyncadd %s425, %s433
          %s435 = smul.addr %s22, 16
          %s436 = smul.addr %s435, 128
          %s437 = scalar_lea.hbm %s5, %s436
          %s438 = sshll.u32 %s428, 4
          %s439 = int_to_ptr.vmem [resolvable:$true] %s438
          %444 = dma.vmem_to_hbm [thread:$0]  %s439, 2048, %s437, %s425, 256, 256, 16
        $region48: #{tpu_custom_call.1} parent=39 // pred_fallthru
          _
      $region40: #{tpu_custom_call.1} parent=5 // pred_fallthru
        _
      %p445 = scmp.le.s32.totalorder 2, %s17
      // Predicated region
      $region49: #{tpu_custom_call.1} parent=5 // pred_check
        %p446 = pneg %p445
      $region50: #{tpu_custom_call.1} parent=5 // pred_check_branch
        %448 = sbr.rel (%p446) target = $region52
      $region51: #{tpu_custom_call.1} parent=5 // pred_region
        %s449 = ssub.s32 %s17, 2
        // Predicated region
        $region53: #{tpu_custom_call.1} parent=51 // pred_check
          %p450 = pneg %p156
        $region54: #{tpu_custom_call.1} parent=51 // pred_check_branch
          %452 = sbr.rel (%p450) target = $region56
        $region55: #{tpu_custom_call.1} parent=51 // pred_region
          %s453 = sand.u32 %s141, 1
          %s454 = scalar_lea.sflag [#allocation4], %s453
          %s455 = sand.u32 %s141, 1
          %s456 = smul.addr %s455, 128
          %s457 = scalar_lea.vmem [#allocation5], %s456
          %458 = dma.done %s454, 2048
        $region56: #{tpu_custom_call.1} parent=51 // pred_fallthru
          _
      $region52: #{tpu_custom_call.1} parent=5 // pred_fallthru
        _
    $region6: #{tpu_custom_call.1} parent=1 // loop_footer
      %s21 = sadd.s32 1, %s17
    $region7: #{tpu_custom_call.1} parent=1 // loop_footer_branch
      %16 = sbr.rel target = $region3
    $region8: #{tpu_custom_call.1} parent=1 // loop_exit
      _
    %459 = vsyncpa [#allocation3], 1
    %s460 = scalar_lea.sflag [#allocation3], 1
    %461 = vsyncpa %s460, 1
    %462 = vsyncpa [#allocation4], 1
    %s463 = scalar_lea.sflag [#allocation4], 1
    %464 = vsyncpa %s463, 1

</llo_original>
